<compile_context>
chip_gen: v5e
topology: v5e:2x2
jax: 0.10.0
libtpu: 0.0.40
codegen_flags: <defaults>
</compile_context>

<pallas_src>
import functools

import jax
import jax.numpy as jnp
from jax.experimental import pallas as pl
from jax.experimental.pallas import tpu as pltpu


def _coupling_kernel(x_ref, w1_ref, b1_ref, w2_ref, b2_ref, y_ref, s_ref, *,
                     split):
    x = x_ref[...]
    x1 = x[:, :split]                       # passthrough half (kept in f32)
    x2 = x[:, split:].astype(jnp.float32)

    # Layer 1: hidden = relu(x1 @ W1 + b1); f32 accumulation on the MXU.
    h = jnp.dot(x1.astype(w1_ref.dtype), w1_ref[...],
                preferred_element_type=jnp.float32) + b1_ref[...]
    h = jnp.maximum(h, 0.0)

    # Layer 2 fused: one wide (hidden, 2*split) matmul producing [s-half|t-half].
    p = jnp.dot(h.astype(w2_ref.dtype), w2_ref[...],
                preferred_element_type=jnp.float32) + b2_ref[...]

    s = jnp.tanh(p[:, :split])
    t = p[:, split:]
    y2 = x2 * jnp.exp(s) + t

    # Two direct stores; y == cat([x1, y2], dim=1). No concat intermediate.
    y_ref[:, :split] = x1.astype(y_ref.dtype)
    y_ref[:, split:] = y2.astype(y_ref.dtype)
    s_ref[...] = s.astype(s_ref.dtype)


def _choose_row_tile(B, in_features, split):
    """Pick the batch row tile: big enough to hide grid-step overhead, small
    enough that double-buffered blocks fit a generation-safe VMEM budget."""
    # f32 bytes per batch row of the pipelined blocks: x read + y write + s write.
    row_bytes = 4 * (in_features + in_features + split)
    # Target an x block of ~4 MiB.
    tb = max(8, (4 << 20) // (4 * in_features))
    # Cap: 2x double-buffered (x, y, s) blocks within ~32 MiB (v7x-safe).
    tb = min(tb, max(8, (32 << 20) // (2 * row_bytes)))
    tb = max(8, (tb // 8) * 8)
    if B <= tb:
        return B                      # single block == full array (any B ok)
    # Keep the number of grid steps even -> balanced across v7x's 2 TensorCores.
    n = pl.cdiv(B, tb)
    if n % 2:
        n += 1
    tb = ((pl.cdiv(B, n) + 7) // 8) * 8
    return tb


def affine_coupling_forward(x, params, *, block_rows=None,
                            mxu_dtype=jnp.bfloat16):
    """Forward pass of AffineCouplingLayer.

    x: (B, in_features) float32
    params: dict with w1 (split, hidden), b1 (hidden,), w2 (hidden, 2*split),
            b2 (2*split,)
    block_rows: optional override of the batch row tile (mainly for tests).
    mxu_dtype: dtype fed to the MXU (default bf16; None keeps weights as-is).
               Accumulation, tanh/exp and the s output always stay f32.
    returns (y, s): y (B, in_features) in x.dtype, s (B, split) in f32.
    """
    B, in_features = x.shape
    split = in_features // 2
    hidden = params["w1"].shape[1]

    w1 = params["w1"]
    w2 = params["w2"]
    if mxu_dtype is not None:
        w1 = w1.astype(mxu_dtype)
        w2 = w2.astype(mxu_dtype)
    b1 = params["b1"].reshape(1, hidden).astype(jnp.float32)
    b2 = params["b2"].reshape(1, 2 * split).astype(jnp.float32)

    if block_rows is None:
        tb = _choose_row_tile(B, in_features, split)
    else:
        tb = B if B <= block_rows else max(8, (block_rows // 8) * 8)
    grid = (pl.cdiv(B, tb),)   # ragged last block is masked on writeback

    # VMEM budget / limit (blocks double-buffered + resident weights, +25%).
    row_bytes = 4 * (in_features + in_features + split)
    weight_bytes = (w1.size * w1.dtype.itemsize + w2.size * w2.dtype.itemsize
                    + b1.size * 4 + b2.size * 4)
    vmem_need = 2 * (tb * row_bytes + weight_bytes)
    vmem_limit = min(max(int(vmem_need * 1.25), 32 << 20), 48 << 20)

    cost = pl.CostEstimate(
        flops=6 * B * split * hidden,
        transcendentals=2 * B * split,
        bytes_accessed=4 * B * (2 * in_features + split) + weight_bytes,
    )

    kernel = functools.partial(_coupling_kernel, split=split)

    y, s = pl.pallas_call(
        kernel,
        out_shape=(
            jax.ShapeDtypeStruct((B, in_features), x.dtype),
            jax.ShapeDtypeStruct((B, split), jnp.float32),
        ),
        grid=grid,
        in_specs=[
            pl.BlockSpec((tb, in_features), lambda i: (i, 0)),    # x (batch-tiled)
            pl.BlockSpec((split, hidden), lambda i: (0, 0)),      # w1 (resident)
            pl.BlockSpec((1, hidden), lambda i: (0, 0)),          # b1 (resident)
            pl.BlockSpec((hidden, 2 * split), lambda i: (0, 0)),  # w2 (fused s|t)
            pl.BlockSpec((1, 2 * split), lambda i: (0, 0)),       # b2 (resident)
        ],
        out_specs=(
            pl.BlockSpec((tb, in_features), lambda i: (i, 0)),    # y (full width)
            pl.BlockSpec((tb, split), lambda i: (i, 0)),          # s
        ),
        compiler_params=pltpu.CompilerParams(
            dimension_semantics=("parallel",),   # megacore-shard batch on v7x
            vmem_limit_bytes=vmem_limit,
        ),
        cost_estimate=cost,
    )(x, w1, b1, w2, b2)
    return y, s


def init_params(key, in_features, hidden=128, dtype=jnp.float32):
    """Deterministic PyTorch-style (uniform +/- 1/sqrt(fan_in)) init."""
    split = in_features // 2
    k1, k2, k3, k4 = jax.random.split(key, 4)
    lim1 = 1.0 / jnp.sqrt(split)
    lim2 = 1.0 / jnp.sqrt(hidden)
    return {
        "w1": jax.random.uniform(k1, (split, hidden), dtype, -lim1, lim1),
        "b1": jax.random.uniform(k2, (hidden,), dtype, -lim1, lim1),
        "w2": jax.random.uniform(k3, (hidden, split * 2), dtype, -lim2, lim2),
        "b2": jax.random.uniform(k4, (split * 2,), dtype, -lim2, lim2),
    }


def _reference_forward(x, params):
    split = x.shape[1] // 2
    x1, x2 = x[:, :split], x[:, split:]
    h = jnp.maximum(x1 @ params["w1"] + params["b1"], 0.0)
    p = h @ params["w2"] + params["b2"]
    s = jnp.tanh(p[:, :split])
    t = p[:, split:]
    y2 = x2 * jnp.exp(s) + t
    return jnp.concatenate([x1, y2], axis=1), s


if __name__ == "__main__":
    key = jax.random.PRNGKey(0)
    kx, kp, kx2 = jax.random.split(key, 3)

    # Small shapes consistent with the module: split_size = 32, hidden = 128.
    batch, in_features = 8, 64
    x = jax.random.normal(kx, (batch, in_features), dtype=jnp.float32)
    params = init_params(kp, in_features)
    y_ref, s_ref = _reference_forward(x, params)

    # --- exact f32 MXU path (single block) ---
    y, s = affine_coupling_forward(x, params, mxu_dtype=None)
    jax.block_until_ready((y, s))
    assert y.shape == (batch, in_features) and s.shape == (batch, in_features // 2)
    assert jnp.allclose(y, y_ref, atol=1e-5, rtol=1e-5)
    assert jnp.allclose(s, s_ref, atol=1e-5, rtol=1e-5)

    # --- default bf16 MXU path (v5e/v6e/v7x friendly), loose tolerance ---
    yh, sh = affine_coupling_forward(x, params)
    jax.block_until_ready((yh, sh))
    assert jnp.allclose(yh, y_ref, atol=1e-1, rtol=1e-1)
    assert jnp.allclose(sh, s_ref, atol=1e-1, rtol=1e-1)

    # --- multi-block ragged batch: exercises grid + masked last-block writeback
    #     (no wrapper-side pad / slice) ---
    big_batch = 1037
    xb = jax.random.normal(kx2, (big_batch, in_features), dtype=jnp.float32)
    yb, sb = affine_coupling_forward(xb, params, block_rows=256, mxu_dtype=None)
    jax.block_until_ready((yb, sb))
    yb_ref, sb_ref = _reference_forward(xb, params)
    assert yb.shape == (big_batch, in_features)
    assert jnp.allclose(yb, yb_ref, atol=1e-5, rtol=1e-5)
    assert jnp.allclose(sb, sb_ref, atol=1e-5, rtol=1e-5)

    print("KERNEL_OK")
</pallas_src>

<mosaic_0001>
module attributes {stable_mosaic.version = 11 : i64} {
  func.func @_coupling_kernel(%arg0: i32, %arg1: memref<8x64xf32, #tpu.memory_space<vmem>>, %arg2: memref<32x128xf32, #tpu.memory_space<vmem>>, %arg3: memref<1x128xf32, #tpu.memory_space<vmem>>, %arg4: memref<128x64xf32, #tpu.memory_space<vmem>>, %arg5: memref<1x64xf32, #tpu.memory_space<vmem>>, %arg6: memref<8x64xf32, #tpu.memory_space<vmem>>, %arg7: memref<8x32xf32, #tpu.memory_space<vmem>>) attributes {dimension_semantics = [#tpu.dimension_semantics<parallel>], iteration_bounds = array<i64: 1>, scalar_prefetch = 0 : i64, scratch_operands = 0 : i64, tpu.core_type = #tpu.core_type<tc>, window_params = [{transform_indices = @transform_0, window_bounds = array<i64: 8, 64>}, {pipeline_mode = #tpu.pipeline_mode<synchronous>, transform_indices = @transform_1, window_bounds = array<i64: 32, 128>}, {pipeline_mode = #tpu.pipeline_mode<synchronous>, transform_indices = @transform_2, window_bounds = array<i64: 1, 128>}, {pipeline_mode = #tpu.pipeline_mode<synchronous>, transform_indices = @transform_3, window_bounds = array<i64: 128, 64>}, {pipeline_mode = #tpu.pipeline_mode<synchronous>, transform_indices = @transform_4, window_bounds = array<i64: 1, 64>}, {transform_indices = @transform_5, window_bounds = array<i64: 8, 64>}, {transform_indices = @transform_6, window_bounds = array<i64: 8, 32>}]} {
    %c0 = arith.constant 0 : index
    %c0_0 = arith.constant 0 : index
    %0 = vector.load %arg1[%c0, %c0_0] : memref<8x64xf32, #tpu.memory_space<vmem>>, vector<8x64xf32>
    %1 = vector.extract_strided_slice %0 {offsets = [0, 0], sizes = [8, 32], strides = [1, 1]} : vector<8x64xf32> to vector<8x32xf32>
    %2 = vector.extract_strided_slice %0 {offsets = [0, 32], sizes = [8, 32], strides = [1, 1]} : vector<8x64xf32> to vector<8x32xf32>
    %c0_1 = arith.constant 0 : index
    %c0_2 = arith.constant 0 : index
    %3 = vector.load %arg2[%c0_1, %c0_2] : memref<32x128xf32, #tpu.memory_space<vmem>>, vector<32x128xf32>
    %cst = arith.constant dense<0.000000e+00> : vector<8x128xf32>
    %4 = tpu.matmul %1, %3, %cst {dimension_numbers = #tpu.dot_dimension_numbers<[1], [0], [0], [1], [0, 0, 1, 1], [], []>} : vector<8x32xf32>, vector<32x128xf32>, vector<8x128xf32> -> vector<8x128xf32>
    %c0_3 = arith.constant 0 : index
    %c0_4 = arith.constant 0 : index
    %5 = vector.load %arg3[%c0_3, %c0_4] : memref<1x128xf32, #tpu.memory_space<vmem>>, vector<1x128xf32>
    %6 = vector.broadcast %5 : vector<1x128xf32> to vector<8x128xf32>
    %7 = arith.addf %4, %6 : vector<8x128xf32>
    %cst_5 = arith.constant 0.000000e+00 : f32
    %8 = vector.broadcast %cst_5 : f32 to vector<8x128xf32>
    %9 = arith.maximumf %7, %8 : vector<8x128xf32>
    %c0_6 = arith.constant 0 : index
    %c0_7 = arith.constant 0 : index
    %10 = vector.load %arg4[%c0_6, %c0_7] : memref<128x64xf32, #tpu.memory_space<vmem>>, vector<128x64xf32>
    %cst_8 = arith.constant dense<0.000000e+00> : vector<8x64xf32>
    %11 = tpu.matmul %9, %10, %cst_8 {dimension_numbers = #tpu.dot_dimension_numbers<[1], [0], [0], [1], [0, 0, 1, 1], [], []>} : vector<8x128xf32>, vector<128x64xf32>, vector<8x64xf32> -> vector<8x64xf32>
    %c0_9 = arith.constant 0 : index
    %c0_10 = arith.constant 0 : index
    %12 = vector.load %arg5[%c0_9, %c0_10] : memref<1x64xf32, #tpu.memory_space<vmem>>, vector<1x64xf32>
    %13 = vector.broadcast %12 : vector<1x64xf32> to vector<8x64xf32>
    %14 = arith.addf %11, %13 : vector<8x64xf32>
    %15 = vector.extract_strided_slice %14 {offsets = [0, 0], sizes = [8, 32], strides = [1, 1]} : vector<8x64xf32> to vector<8x32xf32>
    %16 = math.tanh %15 : vector<8x32xf32>
    %17 = vector.extract_strided_slice %14 {offsets = [0, 32], sizes = [8, 32], strides = [1, 1]} : vector<8x64xf32> to vector<8x32xf32>
    %18 = math.exp %16 : vector<8x32xf32>
    %19 = arith.mulf %2, %18 : vector<8x32xf32>
    %20 = arith.addf %19, %17 : vector<8x32xf32>
    %c0_11 = arith.constant 0 : index
    %c0_12 = arith.constant 0 : index
    %21 = vector.load %arg6[%c0_11, %c0_12] : memref<8x64xf32, #tpu.memory_space<vmem>>, vector<8x32xf32>
    tpu.vector_store %arg6[%c0_11, %c0_12], %1 {strides = array<i32>} : memref<8x64xf32, #tpu.memory_space<vmem>>, vector<8x32xf32>,
    %c0_13 = arith.constant 0 : index
    %c32 = arith.constant 32 : index
    %22 = vector.load %arg6[%c0_13, %c32] : memref<8x64xf32, #tpu.memory_space<vmem>>, vector<8x32xf32>
    tpu.vector_store %arg6[%c0_13, %c32], %20 {strides = array<i32>} : memref<8x64xf32, #tpu.memory_space<vmem>>, vector<8x32xf32>,
    %c0_14 = arith.constant 0 : index
    %c0_15 = arith.constant 0 : index
    %23 = vector.load %arg7[%c0_14, %c0_15] : memref<8x32xf32, #tpu.memory_space<vmem>>, vector<8x32xf32>
    tpu.vector_store %arg7[%c0_14, %c0_15], %16 {strides = array<i32>} : memref<8x32xf32, #tpu.memory_space<vmem>>, vector<8x32xf32>,
    return
  }
  func.func @transform_0(%arg0: i32) -> (i32, i32) {
    %c0_i32 = arith.constant 0 : i32
    %c0_i32_0 = arith.constant 0 : i32
    return %arg0, %c0_i32 : i32, i32
  }
  func.func @transform_1(%arg0: i32) -> (i32, i32) {
    %c0_i32 = arith.constant 0 : i32
    %c0_i32_0 = arith.constant 0 : i32
    %c0_i32_1 = arith.constant 0 : i32
    return %c0_i32, %c0_i32_0 : i32, i32
  }
  func.func @transform_2(%arg0: i32) -> (i32, i32) {
    %c0_i32 = arith.constant 0 : i32
    %c0_i32_0 = arith.constant 0 : i32
    %c0_i32_1 = arith.constant 0 : i32
    return %c0_i32, %c0_i32_0 : i32, i32
  }
  func.func @transform_3(%arg0: i32) -> (i32, i32) {
    %c0_i32 = arith.constant 0 : i32
    %c0_i32_0 = arith.constant 0 : i32
    %c0_i32_1 = arith.constant 0 : i32
    return %c0_i32, %c0_i32_0 : i32, i32
  }
  func.func @transform_4(%arg0: i32) -> (i32, i32) {
    %c0_i32 = arith.constant 0 : i32
    %c0_i32_0 = arith.constant 0 : i32
    %c0_i32_1 = arith.constant 0 : i32
    return %c0_i32, %c0_i32_0 : i32, i32
  }
  func.func @transform_5(%arg0: i32) -> (i32, i32) {
    %c0_i32 = arith.constant 0 : i32
    %c0_i32_0 = arith.constant 0 : i32
    return %arg0, %c0_i32 : i32, i32
  }
  func.func @transform_6(%arg0: i32) -> (i32, i32) {
    %c0_i32 = arith.constant 0 : i32
    %c0_i32_0 = arith.constant 0 : i32
    return %arg0, %c0_i32 : i32, i32
  }
}

</mosaic_0001>

<llo_original>
// kernel: tpu_custom_call.1
$region0: #{tpu_custom_call.1}
  #allocation0 [shape = 'u32[]', space=smem, size = 0x4, offset = 0x4, fixed_abs, tag = 'smem constant byte address 0x4 - core index']
  #allocation1 [shape = 'u32[72,128]{1,0:T(1,128)}', space=vmem, size = 0x9000, scoped, tag = 'internal scratch']
  %s0 = inlined_call_operand.vmem [shape: f32[8,64], index: 0, kind: input, shape index: {}]
  %s1 = inlined_call_operand.vmem [shape: f32[32,128], index: 1, kind: input, shape index: {}]
  %s2 = inlined_call_operand.vmem [shape: f32[1,128], index: 2, kind: input, shape index: {}]
  %s3 = inlined_call_operand.vmem [shape: f32[128,64], index: 3, kind: input, shape index: {}]
  %s4 = inlined_call_operand.vmem [shape: f32[1,64], index: 4, kind: input, shape index: {}]
  %s5 = inlined_call_operand.hbm [shape: f32[8,64], index: 5, kind: output, shape index: {0}]
  %s6 = inlined_call_operand.hbm [shape: f32[8,32], index: 6, kind: output, shape index: {1}]
  %7 = xla_tuple %s5, %s6
  %s8 = sld [smem:[#allocation0]]
  $region38: #{tpu_custom_call.1} parent=0
    _
  %s10 = ssub.s32 1, %s8
  %s11 = scalar_select 0, %s10, %s8
  $region1: #{tpu_custom_call.1} parent=0
    #allocation2 [shape = 'u8[4096]{0}', space=vmem, size = 0x1000, scoped, tag = 'output window, operand 0, single buffered']
    #allocation3 [shape = 's32[1]{0}', space=sflag, size = 0x4, scoped, tag = 'scoped memory for tpu_custom_call.1']
    #allocation4 [shape = 'u8[4096]{0}', space=vmem, size = 0x1000, scoped, tag = 'output window, operand 1, single buffered']
    #allocation5 [shape = 's32[1]{0}', space=sflag, size = 0x4, scoped, tag = 'scoped memory for tpu_custom_call.1']
    %12 = vsyncpa [#allocation3], 0
    %13 = vsyncpa [#allocation5], 0
    // Predicated region
    $region2: #{tpu_custom_call.1} parent=1 // pred_check
      _
    $region3: #{tpu_custom_call.1} parent=1 // pred_check_branch
      %15 = sbr.rel (0) target = $region5
    $region4: #{tpu_custom_call.1} parent=1 // pred_region
      _
    $region5: #{tpu_custom_call.1} parent=1 // pred_fallthru
      _
    // Predicated region
    $region6: #{tpu_custom_call.1} parent=1 // pred_check
      _
    $region7: #{tpu_custom_call.1} parent=1 // pred_check_branch
      %17 = sbr.rel (0) target = $region9
    $region8: #{tpu_custom_call.1} parent=1 // pred_region
      _
    $region9: #{tpu_custom_call.1} parent=1 // pred_fallthru
      _
    // Predicated region
    $region10: #{tpu_custom_call.1} parent=1 // pred_check
      _
    $region11: #{tpu_custom_call.1} parent=1 // pred_check_branch
      %19 = sbr.rel (0) target = $region13
    $region12: #{tpu_custom_call.1} parent=1 // pred_region
      _
    $region13: #{tpu_custom_call.1} parent=1 // pred_fallthru
      _
    // Predicated region
    $region14: #{tpu_custom_call.1} parent=1 // pred_check
      _
    $region15: #{tpu_custom_call.1} parent=1 // pred_check_branch
      %21 = sbr.rel (0) target = $region17
    $region16: #{tpu_custom_call.1} parent=1 // pred_region
      _
    $region17: #{tpu_custom_call.1} parent=1 // pred_fallthru
      _
    // Predicated region
    $region18: #{tpu_custom_call.1} parent=1 // pred_check
      _
    $region19: #{tpu_custom_call.1} parent=1 // pred_check_branch
      %23 = sbr.rel (0) target = $region21
    $region20: #{tpu_custom_call.1} parent=1 // pred_region
      _
    $region21: #{tpu_custom_call.1} parent=1 // pred_fallthru
      _
    %v24 = vld [vmem:[%s0] sm:$0xff]
    %v25 = vld [vmem:[%s1] sm:$0xff]
    %v26 = vld [vmem:[%s1 + $0x8] sm:$0xff]
    %v27 = vld [vmem:[%s1 + $0x10] sm:$0xff]
    %v28 = vld [vmem:[%s1 + $0x18] sm:$0xff]
    %v29 = vld [vmem:[%s2] sm:$0x1]
    %v31 = vperm.slane %v29, 0
    %vm33 = vcmask 261120
    %v35 = vsel %vm33, %v24, 0
    %37 = vmatpush.msra.mxu0 0.0
    %38 = vmatpush.msra.mxu0 0.0
    %39 = vmatpush.msra.mxu0 0.0
    %40 = vmatpush.msra.mxu0 0.0
    %41 = vmatpush.msra.mxu0 0.0
    %42 = vmatpush.msra.mxu0 0.0
    %43 = vmatpush.msra.mxu0 0.0
    %44 = vmatpush.msra.mxu0 0.0
    %45 = vmatpush.msra.mxu0 0.0
    %46 = vmatpush.msra.mxu0 0.0
    %47 = vmatpush.msra.mxu0 0.0
    %48 = vmatpush.msra.mxu0 0.0
    %49 = vmatpush.msra.mxu0 %v28
    %50 = vmatpush.msra.mxu0 %v27
    %51 = vmatpush.msra.mxu0 %v26
    %52 = vmatpush.msra.mxu0 %v25
    %53 = vmatmul.f32.gmra.mxu0 %v35
    %v54 = vpop.f32.mrf.mxu0
    %v55 = vadd.f32 %v31, %v54
    %56 = vdwg.mxu0
    %v57 = vmax.f32 %v55, 0.0
    %v58 = vld [vmem:[%s3] sm:$0xff]
    %v59 = vld [vmem:[%s3 + $0x8] sm:$0xff]
    %v60 = vld [vmem:[%s3 + $0x10] sm:$0xff]
    %v61 = vld [vmem:[%s3 + $0x18] sm:$0xff]
    %v62 = vld [vmem:[%s3 + $0x20] sm:$0xff]
    %v63 = vld [vmem:[%s3 + $0x28] sm:$0xff]
    %v64 = vld [vmem:[%s3 + $0x30] sm:$0xff]
    %v65 = vld [vmem:[%s3 + $0x38] sm:$0xff]
    %v66 = vld [vmem:[%s3 + $0x40] sm:$0xff]
    %v67 = vld [vmem:[%s3 + $0x48] sm:$0xff]
    %v68 = vld [vmem:[%s3 + $0x50] sm:$0xff]
    %v69 = vld [vmem:[%s3 + $0x58] sm:$0xff]
    %v70 = vld [vmem:[%s3 + $0x60] sm:$0xff]
    %v71 = vld [vmem:[%s3 + $0x68] sm:$0xff]
    %v72 = vld [vmem:[%s3 + $0x70] sm:$0xff]
    %v73 = vld [vmem:[%s3 + $0x78] sm:$0xff]
    %v74 = vld [vmem:[%s4] sm:$0x1]
    %v76 = vperm.slane %v74, 0
    %78 = vmatpush.msra.mxu0 %v73
    %79 = vmatpush.msra.mxu0 %v72
    %80 = vmatpush.msra.mxu0 %v71
    %81 = vmatpush.msra.mxu0 %v70
    %82 = vmatpush.msra.mxu0 %v69
    %83 = vmatpush.msra.mxu0 %v68
    %84 = vmatpush.msra.mxu0 %v67
    %85 = vmatpush.msra.mxu0 %v66
    %86 = vmatpush.msra.mxu0 %v65
    %87 = vmatpush.msra.mxu0 %v64
    %88 = vmatpush.msra.mxu0 %v63
    %89 = vmatpush.msra.mxu0 %v62
    %90 = vmatpush.msra.mxu0 %v61
    %91 = vmatpush.msra.mxu0 %v60
    %92 = vmatpush.msra.mxu0 %v59
    %93 = vmatpush.msra.mxu0 %v58
    %94 = vmatmul.f32.gmra.mxu0 %v57
    %v95 = vpop.f32.mrf.mxu0
    %v96 = vadd.f32 %v76, %v95
    %97 = vdwg.mxu0
    %v98 = vtanh.pop %v96
    %v99 = vmul.f32 %v98, 1.442695
    %v100 = vpow.pop %v99
    %102 = vrot.lane.b32.xlu0 %v100, 32
    %v103 = vpop.permute.xlu0 %102
    %v105 = vmul.f32 %v24, %v103
    %v106 = vadd.f32 %v105, %v96
    %107 = vst.msk [vmem:[#allocation2] sm:$0xff] %vm33, %v24
    %vm108 = vcmask 523520
    %109 = vst.msk [vmem:[#allocation2] sm:$0xff] %vm108, %v106
    %110 = vst.msk [vmem:[#allocation4] sm:$0xff] %vm33, %v98
    // Predicated region
    $region22: #{tpu_custom_call.1} parent=1 // pred_check
      _
    $region23: #{tpu_custom_call.1} parent=1 // pred_check_branch
      %112 = sbr.rel (0) target = $region25
    $region24: #{tpu_custom_call.1} parent=1 // pred_region
      %114 = vsyncadd [#allocation3], 0
      %s116 = sshll.u32 [#allocation2], 4
      %s117 = int_to_ptr.vmem [resolvable:$true] %s116
      %s118 = sshll.u32 %s5, 4
      %s119 = int_to_ptr.hbm [resolvable:$true] %s118
      %121 = dma.vmem_to_hbm [thread:$0]  %s117, 128, %s119, [#allocation3]
    $region25: #{tpu_custom_call.1} parent=1 // pred_fallthru
      _
    // Predicated region
    $region26: #{tpu_custom_call.1} parent=1 // pred_check
      _
    $region27: #{tpu_custom_call.1} parent=1 // pred_check_branch
      %123 = sbr.rel (0) target = $region29
    $region28: #{tpu_custom_call.1} parent=1 // pred_region
      %125 = vsyncadd [#allocation5], 0
      %s127 = sshll.u32 [#allocation4], 4
      %s128 = int_to_ptr.vmem [resolvable:$true] %s127
      %s129 = sshll.u32 %s6, 4
      %s130 = int_to_ptr.hbm [resolvable:$true] %s129
      %132 = dma.vmem_to_hbm [thread:$0]  %s128, 128, %s130, [#allocation5]
    $region29: #{tpu_custom_call.1} parent=1 // pred_fallthru
      _
    // Predicated region
    $region30: #{tpu_custom_call.1} parent=1 // pred_check
      _
    $region31: #{tpu_custom_call.1} parent=1 // pred_check_branch
      %134 = sbr.rel (0) target = $region33
    $region32: #{tpu_custom_call.1} parent=1 // pred_region
      %136 = dma.done [#allocation3], 128
    $region33: #{tpu_custom_call.1} parent=1 // pred_fallthru
      _
    // Predicated region
    $region34: #{tpu_custom_call.1} parent=1 // pred_check
      _
    $region35: #{tpu_custom_call.1} parent=1 // pred_check_branch
      %138 = sbr.rel (0) target = $region37
    $region36: #{tpu_custom_call.1} parent=1 // pred_region
      %140 = dma.done [#allocation5], 128
    $region37: #{tpu_custom_call.1} parent=1 // pred_fallthru
      _
    %141 = vsyncpa [#allocation3], 1
    %142 = vsyncpa [#allocation5], 1

</llo_original>
